<compile_context>
chip_gen: v7x
topology: tpu7x:2x2x1
jax: 0.10.0
libtpu: 0.0.40
codegen_flags: <defaults>
</compile_context>

<pallas_src>
import functools

import jax
import jax.numpy as jnp
from jax import lax
from jax.experimental import pallas as pl
from jax.experimental.pallas import tpu as pltpu  # noqa: F401  (kept for TPU-specific params if needed)

LANE = 128


def _round_up(v, m):
    return ((v + m - 1) // m) * m


# ---------------------------------------------------------------------------
# Fused Pallas kernel: the entire QGCN forward pass in one call.
# ---------------------------------------------------------------------------
def qgcn_fused_kernel(a_ref, x_ref, w1_ref, b1_ref, w2_ref, b2_ref,
                      wl_ref, bl_ref, y_ref, lp_ref, *, out_dim):
    """y = (tanh(Â tanh(Â X W1 + b1) W2 + b2)) Wl + bl ; lp = log_softmax(y[:, :out_dim])."""
    a = a_ref[...]

    # --- GCN layer 1: h1 = tanh( Â @ (X @ W1) + b1 ) -----------------------
    xw1 = jnp.dot(x_ref[...], w1_ref[...], preferred_element_type=jnp.float32)
    h1 = jnp.tanh(jnp.dot(a, xw1, preferred_element_type=jnp.float32) + b1_ref[...])

    # --- GCN layer 2: h2 = tanh( Â @ (h1 @ W2) + b2 ) -----------------------
    hw2 = jnp.dot(h1, w2_ref[...], preferred_element_type=jnp.float32)
    h2 = jnp.tanh(jnp.dot(a, hw2, preferred_element_type=jnp.float32) + b2_ref[...])

    # --- Linear head --------------------------------------------------------
    y = jnp.dot(h2, wl_ref[...], preferred_element_type=jnp.float32) + bl_ref[...]
    y_ref[...] = y

    # --- log_softmax over the *valid* (first out_dim) columns only ----------
    col = lax.broadcasted_iota(jnp.int32, y.shape, 1)
    ym = jnp.where(col < out_dim, y, jnp.float32(-1e30))   # mask padded logits
    m = jnp.max(ym, axis=1, keepdims=True)
    z = ym - m
    lse = jnp.log(jnp.sum(jnp.exp(z), axis=1, keepdims=True))
    lp_ref[...] = z - lse


# ---------------------------------------------------------------------------
# Wrapper: pad to lane-dense shapes, one pallas_call, slice results.
# ---------------------------------------------------------------------------
def _full_spec(shape):
    return pl.BlockSpec(shape, lambda: (0,) * len(shape))


def _pad2(x, rows, cols):
    return jnp.pad(x, ((0, rows - x.shape[0]), (0, cols - x.shape[1])))


def build_norm_adj(edge_index, num_nodes):
    """Dense symmetrically-normalized adjacency with self-loops (GCNConv default)."""
    src = edge_index[0]
    dst = edge_index[1]
    adj = jnp.zeros((num_nodes, num_nodes), jnp.float32).at[dst, src].set(1.0)
    adj = adj + jnp.eye(num_nodes, dtype=jnp.float32)
    deg = jnp.sum(adj, axis=1)
    dinv = jnp.where(deg > 0, 1.0 / jnp.sqrt(deg), 0.0)
    return dinv[:, None] * adj * dinv[None, :]


def qgcn_forward(x, edge_index, params):
    n, in_dim = x.shape
    h_dim = params["w1"].shape[1]
    out_dim = params["wl"].shape[1]

    # lane-dense padding (last dim -> multiple of 128; node dim too so Â is dense)
    n_pad = _round_up(max(n, 8), LANE)
    in_pad = _round_up(in_dim, LANE)
    h_pad = _round_up(h_dim, LANE)
    out_pad = _round_up(out_dim, LANE)

    a_hat = build_norm_adj(edge_index, n)

    a_p = _pad2(a_hat, n_pad, n_pad)
    x_p = _pad2(x, n_pad, in_pad)
    w1_p = _pad2(params["w1"], in_pad, h_pad)
    w2_p = _pad2(params["w2"], h_pad, h_pad)
    wl_p = _pad2(params["wl"], h_pad, out_pad)
    b1_p = jnp.pad(params["b1"], (0, h_pad - h_dim)).reshape(1, h_pad)
    b2_p = jnp.pad(params["b2"], (0, h_pad - h_dim)).reshape(1, h_pad)
    bl_p = jnp.pad(params["bl"], (0, out_pad - out_dim)).reshape(1, out_pad)

    flops = 2 * (n_pad * in_pad * h_pad        # X @ W1
                 + n_pad * n_pad * h_pad       # Â @ (X W1)
                 + n_pad * h_pad * h_pad       # h1 @ W2
                 + n_pad * n_pad * h_pad       # Â @ (h1 W2)
                 + n_pad * h_pad * out_pad)    # h2 @ Wl
    transcendentals = 2 * n_pad * h_pad + n_pad * out_pad   # tanh x2 + exp
    bytes_accessed = 4 * (a_p.size + x_p.size + w1_p.size + w2_p.size + wl_p.size
                          + b1_p.size + b2_p.size + bl_p.size + 2 * n_pad * out_pad)

    kernel = functools.partial(qgcn_fused_kernel, out_dim=out_dim)

    y_p, lp_p = pl.pallas_call(
        kernel,
        out_shape=(jax.ShapeDtypeStruct((n_pad, out_pad), jnp.float32),
                   jax.ShapeDtypeStruct((n_pad, out_pad), jnp.float32)),
        in_specs=[_full_spec(a_p.shape), _full_spec(x_p.shape),
                  _full_spec(w1_p.shape), _full_spec(b1_p.shape),
                  _full_spec(w2_p.shape), _full_spec(b2_p.shape),
                  _full_spec(wl_p.shape), _full_spec(bl_p.shape)],
        out_specs=(_full_spec((n_pad, out_pad)), _full_spec((n_pad, out_pad))),
        cost_estimate=pl.CostEstimate(flops=int(flops),
                                      transcendentals=int(transcendentals),
                                      bytes_accessed=int(bytes_accessed)),
    )(a_p, x_p, w1_p, b1_p, w2_p, b2_p, wl_p, bl_p)

    return y_p[:n, :out_dim], lp_p[:n, :out_dim]


# ---------------------------------------------------------------------------
# Pure-JAX reference (for correctness check) and deterministic init
# ---------------------------------------------------------------------------
def qgcn_reference(x, edge_index, params):
    a = build_norm_adj(edge_index, x.shape[0])
    h1 = jnp.tanh(a @ (x @ params["w1"]) + params["b1"])
    h2 = jnp.tanh(a @ (h1 @ params["w2"]) + params["b2"])
    y = h2 @ params["wl"] + params["bl"]
    return y, jax.nn.log_softmax(y, axis=1)


def init_params(key, in_dim, h_dim, out_dim):
    k1, k2, k3 = jax.random.split(key, 3)
    scale = 0.1
    return {
        "w1": scale * jax.random.normal(k1, (in_dim, h_dim), jnp.float32),
        "b1": jnp.zeros((h_dim,), jnp.float32),
        "w2": scale * jax.random.normal(k2, (h_dim, h_dim), jnp.float32),
        "b2": jnp.zeros((h_dim,), jnp.float32),
        "wl": scale * jax.random.normal(k3, (h_dim, out_dim), jnp.float32),
        "bl": jnp.zeros((out_dim,), jnp.float32),
    }


if __name__ == "__main__":
    key = jax.random.PRNGKey(0)
    N, IN_DIM, H_DIM, OUT_DIM = 16, 8, 32, 4

    kx, ke, kp = jax.random.split(key, 3)
    x = jax.random.normal(kx, (N, IN_DIM), jnp.float32)

    # small deterministic undirected edge list (ring graph), shape [2, E]
    src = jnp.arange(N, dtype=jnp.int32)
    dst = (src + 1) % N
    edge_index = jnp.stack(
        [jnp.concatenate([src, dst]), jnp.concatenate([dst, src])], axis=0
    )

    params = init_params(kp, IN_DIM, H_DIM, OUT_DIM)

    fwd = jax.jit(qgcn_forward)
    y, logp = fwd(x, edge_index, params)
    jax.block_until_ready((y, logp))

    # correctness: shapes, normalized log-probs, match pure-JAX reference
    assert y.shape == (N, OUT_DIM) and logp.shape == (N, OUT_DIM)
    assert jnp.allclose(jnp.sum(jnp.exp(logp), axis=1), 1.0, atol=1e-4)
    y_ref, logp_ref = qgcn_reference(x, edge_index, params)
    assert jnp.allclose(y, y_ref, atol=1e-4, rtol=1e-4)
    assert jnp.allclose(logp, logp_ref, atol=1e-4, rtol=1e-4)

    print("KERNEL_OK")
</pallas_src>

<mosaic_0001>
module attributes {stable_mosaic.version = 11 : i64} {
  func.func @qgcn_fused_kernel(%arg0: memref<128x128xf32, #tpu.memory_space<vmem>>, %arg1: memref<128x128xf32, #tpu.memory_space<vmem>>, %arg2: memref<128x128xf32, #tpu.memory_space<vmem>>, %arg3: memref<1x128xf32, #tpu.memory_space<vmem>>, %arg4: memref<128x128xf32, #tpu.memory_space<vmem>>, %arg5: memref<1x128xf32, #tpu.memory_space<vmem>>, %arg6: memref<128x128xf32, #tpu.memory_space<vmem>>, %arg7: memref<1x128xf32, #tpu.memory_space<vmem>>, %arg8: memref<128x128xf32, #tpu.memory_space<vmem>>, %arg9: memref<128x128xf32, #tpu.memory_space<vmem>>) attributes {dimension_semantics = [], scalar_prefetch = 0 : i64, scratch_operands = 0 : i64, tpu.core_type = #tpu.core_type<tc>} {
    %c0 = arith.constant 0 : index
    %c0_0 = arith.constant 0 : index
    %0 = vector.load %arg0[%c0, %c0_0] : memref<128x128xf32, #tpu.memory_space<vmem>>, vector<128x128xf32>
    %c0_1 = arith.constant 0 : index
    %c0_2 = arith.constant 0 : index
    %1 = vector.load %arg1[%c0_1, %c0_2] : memref<128x128xf32, #tpu.memory_space<vmem>>, vector<128x128xf32>
    %c0_3 = arith.constant 0 : index
    %c0_4 = arith.constant 0 : index
    %2 = vector.load %arg2[%c0_3, %c0_4] : memref<128x128xf32, #tpu.memory_space<vmem>>, vector<128x128xf32>
    %cst = arith.constant dense<0.000000e+00> : vector<128x128xf32>
    %3 = tpu.matmul %1, %2, %cst {dimension_numbers = #tpu.dot_dimension_numbers<[1], [0], [0], [1], [0, 0, 1, 1], [], []>} : vector<128x128xf32>, vector<128x128xf32>, vector<128x128xf32> -> vector<128x128xf32>
    %cst_5 = arith.constant dense<0.000000e+00> : vector<128x128xf32>
    %4 = tpu.matmul %0, %3, %cst_5 {dimension_numbers = #tpu.dot_dimension_numbers<[1], [0], [0], [1], [0, 0, 1, 1], [], []>} : vector<128x128xf32>, vector<128x128xf32>, vector<128x128xf32> -> vector<128x128xf32>
    %c0_6 = arith.constant 0 : index
    %c0_7 = arith.constant 0 : index
    %5 = vector.load %arg3[%c0_6, %c0_7] : memref<1x128xf32, #tpu.memory_space<vmem>>, vector<1x128xf32>
    %6 = vector.broadcast %5 : vector<1x128xf32> to vector<128x128xf32>
    %7 = arith.addf %4, %6 : vector<128x128xf32>
    %8 = math.tanh %7 : vector<128x128xf32>
    %c0_8 = arith.constant 0 : index
    %c0_9 = arith.constant 0 : index
    %9 = vector.load %arg4[%c0_8, %c0_9] : memref<128x128xf32, #tpu.memory_space<vmem>>, vector<128x128xf32>
    %cst_10 = arith.constant dense<0.000000e+00> : vector<128x128xf32>
    %10 = tpu.matmul %8, %9, %cst_10 {dimension_numbers = #tpu.dot_dimension_numbers<[1], [0], [0], [1], [0, 0, 1, 1], [], []>} : vector<128x128xf32>, vector<128x128xf32>, vector<128x128xf32> -> vector<128x128xf32>
    %cst_11 = arith.constant dense<0.000000e+00> : vector<128x128xf32>
    %11 = tpu.matmul %0, %10, %cst_11 {dimension_numbers = #tpu.dot_dimension_numbers<[1], [0], [0], [1], [0, 0, 1, 1], [], []>} : vector<128x128xf32>, vector<128x128xf32>, vector<128x128xf32> -> vector<128x128xf32>
    %c0_12 = arith.constant 0 : index
    %c0_13 = arith.constant 0 : index
    %12 = vector.load %arg5[%c0_12, %c0_13] : memref<1x128xf32, #tpu.memory_space<vmem>>, vector<1x128xf32>
    %13 = vector.broadcast %12 : vector<1x128xf32> to vector<128x128xf32>
    %14 = arith.addf %11, %13 : vector<128x128xf32>
    %15 = math.tanh %14 : vector<128x128xf32>
    %c0_14 = arith.constant 0 : index
    %c0_15 = arith.constant 0 : index
    %16 = vector.load %arg6[%c0_14, %c0_15] : memref<128x128xf32, #tpu.memory_space<vmem>>, vector<128x128xf32>
    %cst_16 = arith.constant dense<0.000000e+00> : vector<128x128xf32>
    %17 = tpu.matmul %15, %16, %cst_16 {dimension_numbers = #tpu.dot_dimension_numbers<[1], [0], [0], [1], [0, 0, 1, 1], [], []>} : vector<128x128xf32>, vector<128x128xf32>, vector<128x128xf32> -> vector<128x128xf32>
    %c0_17 = arith.constant 0 : index
    %c0_18 = arith.constant 0 : index
    %18 = vector.load %arg7[%c0_17, %c0_18] : memref<1x128xf32, #tpu.memory_space<vmem>>, vector<1x128xf32>
    %19 = vector.broadcast %18 : vector<1x128xf32> to vector<128x128xf32>
    %20 = arith.addf %17, %19 : vector<128x128xf32>
    %c0_19 = arith.constant 0 : index
    %c0_20 = arith.constant 0 : index
    %21 = vector.load %arg8[%c0_19, %c0_20] : memref<128x128xf32, #tpu.memory_space<vmem>>, vector<128x128xf32>
    tpu.vector_store %arg8[%c0_19, %c0_20], %20 {strides = array<i32>} : memref<128x128xf32, #tpu.memory_space<vmem>>, vector<128x128xf32>,
    %22 = tpu.iota {dimensions = array<i32: 1>} : vector<128x128xi32>
    %c4_i32 = arith.constant 4 : i32
    %23 = vector.broadcast %c4_i32 : i32 to vector<128x128xi32>
    %24 = arith.cmpi slt, %22, %23 : vector<128x128xi32>
    %cst_21 = arith.constant -1.000000e+30 : f32
    %25 = vector.broadcast %cst_21 : f32 to vector<128x128xf32>
    %26 = arith.select %24, %20, %25 : vector<128x128xi1>, vector<128x128xf32>
    %cst_22 = arith.constant dense<0xFF800000> : vector<128xf32>
    %27 = vector.multi_reduction <maximumf>, %26, %cst_22 [1] : vector<128x128xf32> to vector<128xf32>
    %28 = vector.shape_cast %27 : vector<128xf32> to vector<128x1xf32>
    %29 = vector.broadcast %28 : vector<128x1xf32> to vector<128x128xf32>
    %30 = arith.subf %26, %29 : vector<128x128xf32>
    %31 = math.exp %30 : vector<128x128xf32>
    %cst_23 = arith.constant dense<0.000000e+00> : vector<128xf32>
    %32 = vector.multi_reduction <add>, %31, %cst_23 [1] : vector<128x128xf32> to vector<128xf32>
    %33 = vector.shape_cast %32 : vector<128xf32> to vector<128x1xf32>
    %34 = math.log %33 : vector<128x1xf32>
    %35 = vector.broadcast %34 : vector<128x1xf32> to vector<128x128xf32>
    %36 = arith.subf %30, %35 : vector<128x128xf32>
    %c0_24 = arith.constant 0 : index
    %c0_25 = arith.constant 0 : index
    %37 = vector.load %arg9[%c0_24, %c0_25] : memref<128x128xf32, #tpu.memory_space<vmem>>, vector<128x128xf32>
    tpu.vector_store %arg9[%c0_24, %c0_25], %36 {strides = array<i32>} : memref<128x128xf32, #tpu.memory_space<vmem>>, vector<128x128xf32>,
    return
  }
}

</mosaic_0001>

<llo_original>
// kernel: qgcn_forward.1
$region0: #{qgcn_forward.1}
  #allocation0 [shape = 'u32[]', space=smem, size = 0x4, offset = 0x4, fixed_abs, tag = 'smem constant byte address 0x4 - core index']
  #allocation1 [shape = 'u32[144,128]{1,0:T(1,128)}', space=vmem, size = 0x12000, scoped, tag = 'internal scratch']
  %s0 = inlined_call_operand.vmem [shape: f32[128,128], index: 0, kind: input, shape index: {}]
  %s1 = inlined_call_operand.vmem [shape: f32[128,128], index: 1, kind: input, shape index: {}]
  %s2 = inlined_call_operand.vmem [shape: f32[128,128], index: 2, kind: input, shape index: {}]
  %s3 = inlined_call_operand.vmem [shape: f32[1,128], index: 3, kind: input, shape index: {}]
  %s4 = inlined_call_operand.vmem [shape: f32[128,128], index: 4, kind: input, shape index: {}]
  %s5 = inlined_call_operand.vmem [shape: f32[1,128], index: 5, kind: input, shape index: {}]
  %s6 = inlined_call_operand.vmem [shape: f32[128,128], index: 6, kind: input, shape index: {}]
  %s7 = inlined_call_operand.vmem [shape: f32[1,128], index: 7, kind: input, shape index: {}]
  %s8 = inlined_call_operand.vmem [shape: f32[128,128], index: 8, kind: output, shape index: {0}]
  %s9 = inlined_call_operand.vmem [shape: f32[128,128], index: 9, kind: output, shape index: {1}]
  %10 = xla_tuple %s8, %s9
  %s11 = sld [smem:[#allocation0]]
  $region50: #{qgcn_forward.1} parent=0
    _
  %s13 = ssub.s32 1, %s11
  %s14 = scalar_select 0, %s13, %s11
  // Predicated region
  $region2: #{qgcn_forward.1} parent=0 // pred_check
    _
  $region3: #{qgcn_forward.1} parent=0 // pred_check_branch
    %16 = sbr.rel (0) target = $region5
  $region4: #{qgcn_forward.1} parent=0 // pred_region
    _
  $region5: #{qgcn_forward.1} parent=0 // pred_fallthru
    _
  // Predicated region
  $region6: #{qgcn_forward.1} parent=0 // pred_check
    _
  $region7: #{qgcn_forward.1} parent=0 // pred_check_branch
    %18 = sbr.rel (0) target = $region9
  $region8: #{qgcn_forward.1} parent=0 // pred_region
    _
  $region9: #{qgcn_forward.1} parent=0 // pred_fallthru
    _
  // Predicated region
  $region10: #{qgcn_forward.1} parent=0 // pred_check
    _
  $region11: #{qgcn_forward.1} parent=0 // pred_check_branch
    %20 = sbr.rel (0) target = $region13
  $region12: #{qgcn_forward.1} parent=0 // pred_region
    _
  $region13: #{qgcn_forward.1} parent=0 // pred_fallthru
    _
  // Predicated region
  $region14: #{qgcn_forward.1} parent=0 // pred_check
    _
  $region15: #{qgcn_forward.1} parent=0 // pred_check_branch
    %22 = sbr.rel (0) target = $region17
  $region16: #{qgcn_forward.1} parent=0 // pred_region
    _
  $region17: #{qgcn_forward.1} parent=0 // pred_fallthru
    _
  // Predicated region
  $region18: #{qgcn_forward.1} parent=0 // pred_check
    _
  $region19: #{qgcn_forward.1} parent=0 // pred_check_branch
    %24 = sbr.rel (0) target = $region21
  $region20: #{qgcn_forward.1} parent=0 // pred_region
    _
  $region21: #{qgcn_forward.1} parent=0 // pred_fallthru
    _
  // Predicated region
  $region22: #{qgcn_forward.1} parent=0 // pred_check
    _
  $region23: #{qgcn_forward.1} parent=0 // pred_check_branch
    %26 = sbr.rel (0) target = $region25
  $region24: #{qgcn_forward.1} parent=0 // pred_region
    _
  $region25: #{qgcn_forward.1} parent=0 // pred_fallthru
    _
  // Predicated region
  $region26: #{qgcn_forward.1} parent=0 // pred_check
    _
  $region27: #{qgcn_forward.1} parent=0 // pred_check_branch
    %28 = sbr.rel (0) target = $region29
  $region28: #{qgcn_forward.1} parent=0 // pred_region
    _
  $region29: #{qgcn_forward.1} parent=0 // pred_fallthru
    _
  // Predicated region
  $region30: #{qgcn_forward.1} parent=0 // pred_check
    _
  $region31: #{qgcn_forward.1} parent=0 // pred_check_branch
    %30 = sbr.rel (0) target = $region33
  $region32: #{qgcn_forward.1} parent=0 // pred_region
    _
  $region33: #{qgcn_forward.1} parent=0 // pred_fallthru
    _
  %v31 = vld [vmem:[%s0] sm:$0xff]
  %v32 = vld [vmem:[%s0 + $0x8] sm:$0xff]
  %v33 = vld [vmem:[%s0 + $0x10] sm:$0xff]
  %v34 = vld [vmem:[%s0 + $0x18] sm:$0xff]
  %v35 = vld [vmem:[%s0 + $0x20] sm:$0xff]
  %v36 = vld [vmem:[%s0 + $0x28] sm:$0xff]
  %v37 = vld [vmem:[%s0 + $0x30] sm:$0xff]
  %v38 = vld [vmem:[%s0 + $0x38] sm:$0xff]
  %v39 = vld [vmem:[%s0 + $0x40] sm:$0xff]
  %v40 = vld [vmem:[%s0 + $0x48] sm:$0xff]
  %v41 = vld [vmem:[%s0 + $0x50] sm:$0xff]
  %v42 = vld [vmem:[%s0 + $0x58] sm:$0xff]
  %v43 = vld [vmem:[%s0 + $0x60] sm:$0xff]
  %v44 = vld [vmem:[%s0 + $0x68] sm:$0xff]
  %v45 = vld [vmem:[%s0 + $0x70] sm:$0xff]
  %v46 = vld [vmem:[%s0 + $0x78] sm:$0xff]
  %v47 = vld [vmem:[%s1] sm:$0xff]
  %v48 = vld [vmem:[%s1 + $0x8] sm:$0xff]
  %v49 = vld [vmem:[%s1 + $0x10] sm:$0xff]
  %v50 = vld [vmem:[%s1 + $0x18] sm:$0xff]
  %v51 = vld [vmem:[%s1 + $0x20] sm:$0xff]
  %v52 = vld [vmem:[%s1 + $0x28] sm:$0xff]
  %v53 = vld [vmem:[%s1 + $0x30] sm:$0xff]
  %v54 = vld [vmem:[%s1 + $0x38] sm:$0xff]
  %v55 = vld [vmem:[%s1 + $0x40] sm:$0xff]
  %v56 = vld [vmem:[%s1 + $0x48] sm:$0xff]
  %v57 = vld [vmem:[%s1 + $0x50] sm:$0xff]
  %v58 = vld [vmem:[%s1 + $0x58] sm:$0xff]
  %v59 = vld [vmem:[%s1 + $0x60] sm:$0xff]
  %v60 = vld [vmem:[%s1 + $0x68] sm:$0xff]
  %v61 = vld [vmem:[%s1 + $0x70] sm:$0xff]
  %v62 = vld [vmem:[%s1 + $0x78] sm:$0xff]
  %v63 = vld [vmem:[%s2] sm:$0xff]
  %v64 = vld [vmem:[%s2 + $0x8] sm:$0xff]
  %v65 = vld [vmem:[%s2 + $0x10] sm:$0xff]
  %v66 = vld [vmem:[%s2 + $0x18] sm:$0xff]
  %v67 = vld [vmem:[%s2 + $0x20] sm:$0xff]
  %v68 = vld [vmem:[%s2 + $0x28] sm:$0xff]
  %v69 = vld [vmem:[%s2 + $0x30] sm:$0xff]
  %v70 = vld [vmem:[%s2 + $0x38] sm:$0xff]
  %v71 = vld [vmem:[%s2 + $0x40] sm:$0xff]
  %v72 = vld [vmem:[%s2 + $0x48] sm:$0xff]
  %v73 = vld [vmem:[%s2 + $0x50] sm:$0xff]
  %v74 = vld [vmem:[%s2 + $0x58] sm:$0xff]
  %v75 = vld [vmem:[%s2 + $0x60] sm:$0xff]
  %v76 = vld [vmem:[%s2 + $0x68] sm:$0xff]
  %v77 = vld [vmem:[%s2 + $0x70] sm:$0xff]
  %v78 = vld [vmem:[%s2 + $0x78] sm:$0xff]
  %79 = vmatprep.subr.mxu0 0.0
  %80 = vmatpush1.msra.mxu0 %v63
  %81 = vmatprep.subr.mxu0 0.0
  %82 = vmatpush1.msra.mxu0 %v64
  %83 = vmatprep.subr.mxu0 0.0
  %84 = vmatpush1.msra.mxu0 %v65
  %85 = vmatprep.subr.mxu0 0.0
  %86 = vmatpush1.msra.mxu0 %v66
  %87 = vmatprep.subr.mxu0 0.0
  %88 = vmatpush1.msra.mxu0 %v67
  %89 = vmatprep.subr.mxu0 0.0
  %90 = vmatpush1.msra.mxu0 %v68
  %91 = vmatprep.subr.mxu0 0.0
  %92 = vmatpush1.msra.mxu0 %v69
  %93 = vmatprep.subr.mxu0 0.0
  %94 = vmatpush1.msra.mxu0 %v70
  %95 = vmatprep.subr.mxu0 0.0
  %96 = vmatpush1.msra.mxu0 %v71
  %97 = vmatprep.subr.mxu0 0.0
  %98 = vmatpush1.msra.mxu0 %v72
  %99 = vmatprep.subr.mxu0 0.0
  %100 = vmatpush1.msra.mxu0 %v73
  %101 = vmatprep.subr.mxu0 0.0
  %102 = vmatpush1.msra.mxu0 %v74
  %103 = vmatprep.subr.mxu0 0.0
  %104 = vmatpush1.msra.mxu0 %v75
  %105 = vmatprep.subr.mxu0 0.0
  %106 = vmatpush1.msra.mxu0 %v76
  %107 = vmatprep.subr.mxu0 0.0
  %108 = vmatpush1.msra.mxu0 %v77
  %109 = vmatprep.subr.mxu0 0.0
  %110 = vmatpush1.msra.mxu0 %v78
  %111 = vmatprep.subr.mxu0 0.0
  %112 = vmatpush1.msra.mxu0 0.0
  %113 = vmatprep.subr.mxu0 0.0
  %114 = vmatpush1.msra.mxu0 0.0
  %115 = vmatprep.subr.mxu0 0.0
  %116 = vmatpush1.msra.mxu0 0.0
  %117 = vmatprep.subr.mxu0 0.0
  %118 = vmatpush1.msra.mxu0 0.0
  %119 = vmatprep.subr.mxu0 0.0
  %120 = vmatpush1.msra.mxu0 0.0
  %121 = vmatprep.subr.mxu0 0.0
  %122 = vmatpush1.msra.mxu0 0.0
  %123 = vmatprep.subr.mxu0 0.0
  %124 = vmatpush1.msra.mxu0 0.0
  %125 = vmatprep.subr.mxu0 0.0
  %126 = vmatpush1.msra.mxu0 0.0
  %127 = vmatprep.subr.mxu0 0.0
  %128 = vmatpush1.msra.mxu0 0.0
  %129 = vmatprep.subr.mxu0 0.0
  %130 = vmatpush1.msra.mxu0 0.0
  %131 = vmatprep.subr.mxu0 0.0
  %132 = vmatpush1.msra.mxu0 0.0
  %133 = vmatprep.subr.mxu0 0.0
  %134 = vmatpush1.msra.mxu0 0.0
  %135 = vmatprep.subr.mxu0 0.0
  %136 = vmatpush1.msra.mxu0 0.0
  %137 = vmatprep.subr.mxu0 0.0
  %138 = vmatpush1.msra.mxu0 0.0
  %139 = vmatprep.subr.mxu0 0.0
  %140 = vmatpush1.msra.mxu0 0.0
  %141 = vmatprep.subr.mxu0 0.0
  %142 = vmatpush1.msra.mxu0 0.0
  %143 = vmatprep.mubr.f32.mxu0 0.0
  %144 = vmatmul.mubr.f32.gmra.mrb[0].mxu0 %v47
  %v145 = vpop.f32.mrb[0].mxu0
  %v146 = vadd.f32 0.0, %v145
  %v147 = vpop.f32.mrb[0].mxu0
  %148 = vmatprep.mubr.f32.mxu0 0.0
  %149 = vmatmul.mubr.f32.gmra.mrb[0].mxu0 %v48
  %v150 = vpop.f32.mrb[0].mxu0
  %v151 = vadd.f32 0.0, %v150
  %v152 = vpop.f32.mrb[0].mxu0
  %153 = vmatprep.mubr.f32.mxu0 0.0
  %154 = vmatmul.mubr.f32.gmra.mrb[0].mxu0 %v49
  %v155 = vpop.f32.mrb[0].mxu0
  %v156 = vadd.f32 0.0, %v155
  %v157 = vpop.f32.mrb[0].mxu0
  %158 = vmatprep.mubr.f32.mxu0 0.0
  %159 = vmatmul.mubr.f32.gmra.mrb[0].mxu0 %v50
  %v160 = vpop.f32.mrb[0].mxu0
  %v161 = vadd.f32 0.0, %v160
  %v162 = vpop.f32.mrb[0].mxu0
  %163 = vmatprep.mubr.f32.mxu0 0.0
  %164 = vmatmul.mubr.f32.gmra.mrb[0].mxu0 %v51
  %v165 = vpop.f32.mrb[0].mxu0
  %v166 = vadd.f32 0.0, %v165
  %v167 = vpop.f32.mrb[0].mxu0
  %168 = vmatprep.mubr.f32.mxu0 0.0
  %169 = vmatmul.mubr.f32.gmra.mrb[0].mxu0 %v52
  %v170 = vpop.f32.mrb[0].mxu0
  %v171 = vadd.f32 0.0, %v170
  %v172 = vpop.f32.mrb[0].mxu0
  %173 = vmatprep.mubr.f32.mxu0 0.0
  %174 = vmatmul.mubr.f32.gmra.mrb[0].mxu0 %v53
  %v175 = vpop.f32.mrb[0].mxu0
  %v176 = vadd.f32 0.0, %v175
  %v177 = vpop.f32.mrb[0].mxu0
  %178 = vmatprep.mubr.f32.mxu0 0.0
  %179 = vmatmul.mubr.f32.gmra.mrb[0].mxu0 %v54
  %v180 = vpop.f32.mrb[0].mxu0
  %v181 = vadd.f32 0.0, %v180
  %v182 = vpop.f32.mrb[0].mxu0
  %183 = vmatprep.mubr.f32.mxu0 0.0
  %184 = vmatmul.mubr.f32.gmra.mrb[0].mxu0 %v55
  %v185 = vpop.f32.mrb[0].mxu0
  %v186 = vadd.f32 0.0, %v185
  %v187 = vpop.f32.mrb[0].mxu0
  %188 = vmatprep.mubr.f32.mxu0 0.0
  %189 = vmatmul.mubr.f32.gmra.mrb[0].mxu0 %v56
  %v190 = vpop.f32.mrb[0].mxu0
  %v191 = vadd.f32 0.0, %v190
  %v192 = vpop.f32.mrb[0].mxu0
  %193 = vmatprep.mubr.f32.mxu0 0.0
  %194 = vmatmul.mubr.f32.gmra.mrb[0].mxu0 %v57
  %v195 = vpop.f32.mrb[0].mxu0
  %v196 = vadd.f32 0.0, %v195
  %v197 = vpop.f32.mrb[0].mxu0
  %198 = vmatprep.mubr.f32.mxu0 0.0
  %199 = vmatmul.mubr.f32.gmra.mrb[0].mxu0 %v58
  %v200 = vpop.f32.mrb[0].mxu0
  %v201 = vadd.f32 0.0, %v200
  %v202 = vpop.f32.mrb[0].mxu0
  %203 = vmatprep.mubr.f32.mxu0 0.0
  %204 = vmatmul.mubr.f32.gmra.mrb[0].mxu0 %v59
  %v205 = vpop.f32.mrb[0].mxu0
  %v206 = vadd.f32 0.0, %v205
  %v207 = vpop.f32.mrb[0].mxu0
  %208 = vmatprep.mubr.f32.mxu0 0.0
  %209 = vmatmul.mubr.f32.gmra.mrb[0].mxu0 %v60
  %v210 = vpop.f32.mrb[0].mxu0
  %v211 = vadd.f32 0.0, %v210
  %v212 = vpop.f32.mrb[0].mxu0
  %213 = vmatprep.mubr.f32.mxu0 0.0
  %214 = vmatmul.mubr.f32.gmra.mrb[0].mxu0 %v61
  %v215 = vpop.f32.mrb[0].mxu0
  %v216 = vadd.f32 0.0, %v215
  %v217 = vpop.f32.mrb[0].mxu0
  %218 = vmatprep.mubr.f32.mxu0 0.0
  %219 = vmatmul.mubr.f32.gmra.mrb[0].mxu0 %v62
  %v220 = vpop.f32.mrb[0].mxu0
  %v221 = vadd.f32 0.0, %v220
  %v222 = vpop.f32.mrb[0].mxu0
  %223 = vdwg.mxu0
  %v224 = vld [vmem:[%s3] sm:$0x1]
  %v226 = vlaneseq
  %v227 = vshrl.u32 %v226, 7
  %v228 = vsub.s32 0, %v227
  %v229 = vrot.slane %v224, %v228
  %231 = vmatprep.subr.mxu0 0.0
  %232 = vmatpush1.msra.mxu0 %v146
  %233 = vmatprep.subr.mxu0 0.0
  %234 = vmatpush1.msra.mxu0 %v151
  %235 = vmatprep.subr.mxu0 0.0
  %236 = vmatpush1.msra.mxu0 %v156
  %237 = vmatprep.subr.mxu0 0.0
  %238 = vmatpush1.msra.mxu0 %v161
  %239 = vmatprep.subr.mxu0 0.0
  %240 = vmatpush1.msra.mxu0 %v166
  %241 = vmatprep.subr.mxu0 0.0
  %242 = vmatpush1.msra.mxu0 %v171
  %243 = vmatprep.subr.mxu0 0.0
  %244 = vmatpush1.msra.mxu0 %v176
  %245 = vmatprep.subr.mxu0 0.0
  %246 = vmatpush1.msra.mxu0 %v181
  %247 = vmatprep.subr.mxu0 0.0
  %248 = vmatpush1.msra.mxu0 %v186
  %249 = vmatprep.subr.mxu0 0.0
  %250 = vmatpush1.msra.mxu0 %v191
  %251 = vmatprep.subr.mxu0 0.0
  %252 = vmatpush1.msra.mxu0 %v196
  %253 = vmatprep.subr.mxu0 0.0
  %254 = vmatpush1.msra.mxu0 %v201
  %255 = vmatprep.subr.mxu0 0.0
  %256 = vmatpush1.msra.mxu0 %v206
  %257 = vmatprep.subr.mxu0 0.0
  %258 = vmatpush1.msra.mxu0 %v211
  %259 = vmatprep.subr.mxu0 0.0
  %260 = vmatpush1.msra.mxu0 %v216
  %261 = vmatprep.subr.mxu0 0.0
  %262 = vmatpush1.msra.mxu0 %v221
  %263 = vmatprep.subr.mxu0 0.0
  %264 = vmatpush1.msra.mxu0 0.0
  %265 = vmatprep.subr.mxu0 0.0
  %266 = vmatpush1.msra.mxu0 0.0
  %267 = vmatprep.subr.mxu0 0.0
  %268 = vmatpush1.msra.mxu0 0.0
  %269 = vmatprep.subr.mxu0 0.0
  %270 = vmatpush1.msra.mxu0 0.0
  %271 = vmatprep.subr.mxu0 0.0
  %272 = vmatpush1.msra.mxu0 0.0
  %273 = vmatprep.subr.mxu0 0.0
  %274 = vmatpush1.msra.mxu0 0.0
  %275 = vmatprep.subr.mxu0 0.0
  %276 = vmatpush1.msra.mxu0 0.0
  %277 = vmatprep.subr.mxu0 0.0
  %278 = vmatpush1.msra.mxu0 0.0
  %279 = vmatprep.subr.mxu0 0.0
  %280 = vmatpush1.msra.mxu0 0.0
  %281 = vmatprep.subr.mxu0 0.0
  %282 = vmatpush1.msra.mxu0 0.0
  %283 = vmatprep.subr.mxu0 0.0
  %284 = vmatpush1.msra.mxu0 0.0
  %285 = vmatprep.subr.mxu0 0.0
  %286 = vmatpush1.msra.mxu0 0.0
  %287 = vmatprep.subr.mxu0 0.0
  %288 = vmatpush1.msra.mxu0 0.0
  %289 = vmatprep.subr.mxu0 0.0
  %290 = vmatpush1.msra.mxu0 0.0
  %291 = vmatprep.subr.mxu0 0.0
  %292 = vmatpush1.msra.mxu0 0.0
  %293 = vmatprep.subr.mxu0 0.0
  %294 = vmatpush1.msra.mxu0 0.0
  %295 = vmatprep.mubr.f32.mxu0 0.0
  %296 = vmatmul.mubr.f32.gmra.mrb[0].mxu0 %v31
  %v297 = vpop.f32.mrb[0].mxu0
  %v298 = vadd.f32 %v229, %v297
  %v299 = vpop.f32.mrb[0].mxu0
  %300 = vmatprep.mubr.f32.mxu0 0.0
  %301 = vmatmul.mubr.f32.gmra.mrb[0].mxu0 %v32
  %v302 = vpop.f32.mrb[0].mxu0
  %v303 = vadd.f32 %v229, %v302
  %v304 = vpop.f32.mrb[0].mxu0
  %305 = vmatprep.mubr.f32.mxu0 0.0
  %306 = vmatmul.mubr.f32.gmra.mrb[0].mxu0 %v33
  %v307 = vpop.f32.mrb[0].mxu0
  %v308 = vadd.f32 %v229, %v307
  %v309 = vpop.f32.mrb[0].mxu0
  %310 = vmatprep.mubr.f32.mxu0 0.0
  %311 = vmatmul.mubr.f32.gmra.mrb[0].mxu0 %v34
  %v312 = vpop.f32.mrb[0].mxu0
  %v313 = vadd.f32 %v229, %v312
  %v314 = vpop.f32.mrb[0].mxu0
  %315 = vmatprep.mubr.f32.mxu0 0.0
  %316 = vmatmul.mubr.f32.gmra.mrb[0].mxu0 %v35
  %v317 = vpop.f32.mrb[0].mxu0
  %v318 = vadd.f32 %v229, %v317
  %v319 = vpop.f32.mrb[0].mxu0
  %320 = vmatprep.mubr.f32.mxu0 0.0
  %321 = vmatmul.mubr.f32.gmra.mrb[0].mxu0 %v36
  %v322 = vpop.f32.mrb[0].mxu0
  %v323 = vadd.f32 %v229, %v322
  %v324 = vpop.f32.mrb[0].mxu0
  %325 = vmatprep.mubr.f32.mxu0 0.0
  %326 = vmatmul.mubr.f32.gmra.mrb[0].mxu0 %v37
  %v327 = vpop.f32.mrb[0].mxu0
  %v328 = vadd.f32 %v229, %v327
  %v329 = vpop.f32.mrb[0].mxu0
  %330 = vmatprep.mubr.f32.mxu0 0.0
  %331 = vmatmul.mubr.f32.gmra.mrb[0].mxu0 %v38
  %v332 = vpop.f32.mrb[0].mxu0
  %v333 = vadd.f32 %v229, %v332
  %v334 = vpop.f32.mrb[0].mxu0
  %335 = vmatprep.mubr.f32.mxu0 0.0
  %336 = vmatmul.mubr.f32.gmra.mrb[0].mxu0 %v39
  %v337 = vpop.f32.mrb[0].mxu0
  %v338 = vadd.f32 %v229, %v337
  %v339 = vpop.f32.mrb[0].mxu0
  %340 = vmatprep.mubr.f32.mxu0 0.0
  %341 = vmatmul.mubr.f32.gmra.mrb[0].mxu0 %v40
  %v342 = vpop.f32.mrb[0].mxu0
  %v343 = vadd.f32 %v229, %v342
  %v344 = vpop.f32.mrb[0].mxu0
  %345 = vmatprep.mubr.f32.mxu0 0.0
  %346 = vmatmul.mubr.f32.gmra.mrb[0].mxu0 %v41
  %v347 = vpop.f32.mrb[0].mxu0
  %v348 = vadd.f32 %v229, %v347
  %v349 = vpop.f32.mrb[0].mxu0
  %350 = vmatprep.mubr.f32.mxu0 0.0
  %351 = vmatmul.mubr.f32.gmra.mrb[0].mxu0 %v42
  %v352 = vpop.f32.mrb[0].mxu0
  %v353 = vadd.f32 %v229, %v352
  %v354 = vpop.f32.mrb[0].mxu0
  %355 = vmatprep.mubr.f32.mxu0 0.0
  %356 = vmatmul.mubr.f32.gmra.mrb[0].mxu0 %v43
  %v357 = vpop.f32.mrb[0].mxu0
  %v358 = vadd.f32 %v229, %v357
  %v359 = vpop.f32.mrb[0].mxu0
  %360 = vmatprep.mubr.f32.mxu0 0.0
  %361 = vmatmul.mubr.f32.gmra.mrb[0].mxu0 %v44
  %v362 = vpop.f32.mrb[0].mxu0
  %v363 = vadd.f32 %v229, %v362
  %v364 = vpop.f32.mrb[0].mxu0
  %365 = vmatprep.mubr.f32.mxu0 0.0
  %366 = vmatmul.mubr.f32.gmra.mrb[0].mxu0 %v45
  %v367 = vpop.f32.mrb[0].mxu0
  %v368 = vadd.f32 %v229, %v367
  %v369 = vpop.f32.mrb[0].mxu0
  %370 = vmatprep.mubr.f32.mxu0 0.0
  %371 = vmatmul.mubr.f32.gmra.mrb[0].mxu0 %v46
  %v372 = vpop.f32.mrb[0].mxu0
  %v373 = vadd.f32 %v229, %v372
  %v374 = vpop.f32.mrb[0].mxu0
  %375 = vdwg.mxu0
  %v376 = vtanh.pop %v298
  %v377 = vtanh.pop %v303
  %v378 = vtanh.pop %v308
  %v379 = vtanh.pop %v313
  %v380 = vtanh.pop %v318
  %v381 = vtanh.pop %v323
  %v382 = vtanh.pop %v328
  %v383 = vtanh.pop %v333
  %v384 = vtanh.pop %v338
  %v385 = vtanh.pop %v343
  %v386 = vtanh.pop %v348
  %v387 = vtanh.pop %v353
  %v388 = vtanh.pop %v358
  %v389 = vtanh.pop %v363
  %v390 = vtanh.pop %v368
  %v391 = vtanh.pop %v373
  %v392 = vld [vmem:[%s4] sm:$0xff]
  %v393 = vld [vmem:[%s4 + $0x8] sm:$0xff]
  %v394 = vld [vmem:[%s4 + $0x10] sm:$0xff]
  %v395 = vld [vmem:[%s4 + $0x18] sm:$0xff]
  %v396 = vld [vmem:[%s4 + $0x20] sm:$0xff]
  %v397 = vld [vmem:[%s4 + $0x28] sm:$0xff]
  %v398 = vld [vmem:[%s4 + $0x30] sm:$0xff]
  %v399 = vld [vmem:[%s4 + $0x38] sm:$0xff]
  %v400 = vld [vmem:[%s4 + $0x40] sm:$0xff]
  %v401 = vld [vmem:[%s4 + $0x48] sm:$0xff]
  %v402 = vld [vmem:[%s4 + $0x50] sm:$0xff]
  %v403 = vld [vmem:[%s4 + $0x58] sm:$0xff]
  %v404 = vld [vmem:[%s4 + $0x60] sm:$0xff]
  %v405 = vld [vmem:[%s4 + $0x68] sm:$0xff]
  %v406 = vld [vmem:[%s4 + $0x70] sm:$0xff]
  %v407 = vld [vmem:[%s4 + $0x78] sm:$0xff]
  %408 = vmatprep.subr.mxu0 0.0
  %409 = vmatpush1.msra.mxu0 %v392
  %410 = vmatprep.subr.mxu0 0.0
  %411 = vmatpush1.msra.mxu0 %v393
  %412 = vmatprep.subr.mxu0 0.0
  %413 = vmatpush1.msra.mxu0 %v394
  %414 = vmatprep.subr.mxu0 0.0
  %415 = vmatpush1.msra.mxu0 %v395
  %416 = vmatprep.subr.mxu0 0.0
  %417 = vmatpush1.msra.mxu0 %v396
  %418 = vmatprep.subr.mxu0 0.0
  %419 = vmatpush1.msra.mxu0 %v397
  %420 = vmatprep.subr.mxu0 0.0
  %421 = vmatpush1.msra.mxu0 %v398
  %422 = vmatprep.subr.mxu0 0.0
  %423 = vmatpush1.msra.mxu0 %v399
  %424 = vmatprep.subr.mxu0 0.0
  %425 = vmatpush1.msra.mxu0 %v400
  %426 = vmatprep.subr.mxu0 0.0
  %427 = vmatpush1.msra.mxu0 %v401
  %428 = vmatprep.subr.mxu0 0.0
  %429 = vmatpush1.msra.mxu0 %v402
  %430 = vmatprep.subr.mxu0 0.0
  %431 = vmatpush1.msra.mxu0 %v403
  %432 = vmatprep.subr.mxu0 0.0
  %433 = vmatpush1.msra.mxu0 %v404
  %434 = vmatprep.subr.mxu0 0.0
  %435 = vmatpush1.msra.mxu0 %v405
  %436 = vmatprep.subr.mxu0 0.0
  %437 = vmatpush1.msra.mxu0 %v406
  %438 = vmatprep.subr.mxu0 0.0
  %439 = vmatpush1.msra.mxu0 %v407
  %440 = vmatprep.subr.mxu0 0.0
  %441 = vmatpush1.msra.mxu0 0.0
  %442 = vmatprep.subr.mxu0 0.0
  %443 = vmatpush1.msra.mxu0 0.0
  %444 = vmatprep.subr.mxu0 0.0
  %445 = vmatpush1.msra.mxu0 0.0
  %446 = vmatprep.subr.mxu0 0.0
  %447 = vmatpush1.msra.mxu0 0.0
  %448 = vmatprep.subr.mxu0 0.0
  %449 = vmatpush1.msra.mxu0 0.0
  %450 = vmatprep.subr.mxu0 0.0
  %451 = vmatpush1.msra.mxu0 0.0
  %452 = vmatprep.subr.mxu0 0.0
  %453 = vmatpush1.msra.mxu0 0.0
  %454 = vmatprep.subr.mxu0 0.0
  %455 = vmatpush1.msra.mxu0 0.0
  %456 = vmatprep.subr.mxu0 0.0
  %457 = vmatpush1.msra.mxu0 0.0
  %458 = vmatprep.subr.mxu0 0.0
  %459 = vmatpush1.msra.mxu0 0.0
  %460 = vmatprep.subr.mxu0 0.0
  %461 = vmatpush1.msra.mxu0 0.0
  %462 = vmatprep.subr.mxu0 0.0
  %463 = vmatpush1.msra.mxu0 0.0
  %464 = vmatprep.subr.mxu0 0.0
  %465 = vmatpush1.msra.mxu0 0.0
  %466 = vmatprep.subr.mxu0 0.0
  %467 = vmatpush1.msra.mxu0 0.0
  %468 = vmatprep.subr.mxu0 0.0
  %469 = vmatpush1.msra.mxu0 0.0
  %470 = vmatprep.subr.mxu0 0.0
  %471 = vmatpush1.msra.mxu0 0.0
  %472 = vmatprep.mubr.f32.mxu0 0.0
  %473 = vmatmul.mubr.f32.gmra.mrb[0].mxu0 %v376
  %v474 = vpop.f32.mrb[0].mxu0
  %v475 = vadd.f32 0.0, %v474
  %v476 = vpop.f32.mrb[0].mxu0
  %477 = vmatprep.mubr.f32.mxu0 0.0
  %478 = vmatmul.mubr.f32.gmra.mrb[0].mxu0 %v377
  %v479 = vpop.f32.mrb[0].mxu0
  %v480 = vadd.f32 0.0, %v479
  %v481 = vpop.f32.mrb[0].mxu0
  %482 = vmatprep.mubr.f32.mxu0 0.0
  %483 = vmatmul.mubr.f32.gmra.mrb[0].mxu0 %v378
  %v484 = vpop.f32.mrb[0].mxu0
  %v485 = vadd.f32 0.0, %v484
  %v486 = vpop.f32.mrb[0].mxu0
  %487 = vmatprep.mubr.f32.mxu0 0.0
  %488 = vmatmul.mubr.f32.gmra.mrb[0].mxu0 %v379
  %v489 = vpop.f32.mrb[0].mxu0
  %v490 = vadd.f32 0.0, %v489
  %v491 = vpop.f32.mrb[0].mxu0
  %492 = vmatprep.mubr.f32.mxu0 0.0
  %493 = vmatmul.mubr.f32.gmra.mrb[0].mxu0 %v380
  %v494 = vpop.f32.mrb[0].mxu0
  %v495 = vadd.f32 0.0, %v494
  %v496 = vpop.f32.mrb[0].mxu0
  %497 = vmatprep.mubr.f32.mxu0 0.0
  %498 = vmatmul.mubr.f32.gmra.mrb[0].mxu0 %v381
  %v499 = vpop.f32.mrb[0].mxu0
  %v500 = vadd.f32 0.0, %v499
  %v501 = vpop.f32.mrb[0].mxu0
  %502 = vmatprep.mubr.f32.mxu0 0.0
  %503 = vmatmul.mubr.f32.gmra.mrb[0].mxu0 %v382
  %v504 = vpop.f32.mrb[0].mxu0
  %v505 = vadd.f32 0.0, %v504
  %v506 = vpop.f32.mrb[0].mxu0
  %507 = vmatprep.mubr.f32.mxu0 0.0
  %508 = vmatmul.mubr.f32.gmra.mrb[0].mxu0 %v383
  %v509 = vpop.f32.mrb[0].mxu0
  %v510 = vadd.f32 0.0, %v509
  %v511 = vpop.f32.mrb[0].mxu0
  %512 = vmatprep.mubr.f32.mxu0 0.0
  %513 = vmatmul.mubr.f32.gmra.mrb[0].mxu0 %v384
  %v514 = vpop.f32.mrb[0].mxu0
  %v515 = vadd.f32 0.0, %v514
  %v516 = vpop.f32.mrb[0].mxu0
  %517 = vmatprep.mubr.f32.mxu0 0.0
  %518 = vmatmul.mubr.f32.gmra.mrb[0].mxu0 %v385
  %v519 = vpop.f32.mrb[0].mxu0
  %v520 = vadd.f32 0.0, %v519
  %v521 = vpop.f32.mrb[0].mxu0
  %522 = vmatprep.mubr.f32.mxu0 0.0
  %523 = vmatmul.mubr.f32.gmra.mrb[0].mxu0 %v386
  %v524 = vpop.f32.mrb[0].mxu0
  %v525 = vadd.f32 0.0, %v524
  %v526 = vpop.f32.mrb[0].mxu0
  %527 = vmatprep.mubr.f32.mxu0 0.0
  %528 = vmatmul.mubr.f32.gmra.mrb[0].mxu0 %v387
  %v529 = vpop.f32.mrb[0].mxu0
  %v530 = vadd.f32 0.0, %v529
  %v531 = vpop.f32.mrb[0].mxu0
  %532 = vmatprep.mubr.f32.mxu0 0.0
  %533 = vmatmul.mubr.f32.gmra.mrb[0].mxu0 %v388
  %v534 = vpop.f32.mrb[0].mxu0
  %v535 = vadd.f32 0.0, %v534
  %v536 = vpop.f32.mrb[0].mxu0
  %537 = vmatprep.mubr.f32.mxu0 0.0
  %538 = vmatmul.mubr.f32.gmra.mrb[0].mxu0 %v389
  %v539 = vpop.f32.mrb[0].mxu0
  %v540 = vadd.f32 0.0, %v539
  %v541 = vpop.f32.mrb[0].mxu0
  %542 = vmatprep.mubr.f32.mxu0 0.0
  %543 = vmatmul.mubr.f32.gmra.mrb[0].mxu0 %v390
  %v544 = vpop.f32.mrb[0].mxu0
  %v545 = vadd.f32 0.0, %v544
  %v546 = vpop.f32.mrb[0].mxu0
  %547 = vmatprep.mubr.f32.mxu0 0.0
  %548 = vmatmul.mubr.f32.gmra.mrb[0].mxu0 %v391
  %v549 = vpop.f32.mrb[0].mxu0
  %v550 = vadd.f32 0.0, %v549
  %v551 = vpop.f32.mrb[0].mxu0
  %552 = vdwg.mxu0
  %v553 = vld [vmem:[%s5] sm:$0x1]
  %v555 = vlaneseq
  %v556 = vshrl.u32 %v555, 7
  %v557 = vsub.s32 0, %v556
  %v558 = vrot.slane %v553, %v557
  %560 = vmatprep.subr.mxu0 0.0
  %561 = vmatpush1.msra.mxu0 %v475
  %562 = vmatprep.subr.mxu0 0.0
  %563 = vmatpush1.msra.mxu0 %v480
  %564 = vmatprep.subr.mxu0 0.0
  %565 = vmatpush1.msra.mxu0 %v485
  %566 = vmatprep.subr.mxu0 0.0
  %567 = vmatpush1.msra.mxu0 %v490
  %568 = vmatprep.subr.mxu0 0.0
  %569 = vmatpush1.msra.mxu0 %v495
  %570 = vmatprep.subr.mxu0 0.0
  %571 = vmatpush1.msra.mxu0 %v500
  %572 = vmatprep.subr.mxu0 0.0
  %573 = vmatpush1.msra.mxu0 %v505
  %574 = vmatprep.subr.mxu0 0.0
  %575 = vmatpush1.msra.mxu0 %v510
  %576 = vmatprep.subr.mxu0 0.0
  %577 = vmatpush1.msra.mxu0 %v515
  %578 = vmatprep.subr.mxu0 0.0
  %579 = vmatpush1.msra.mxu0 %v520
  %580 = vmatprep.subr.mxu0 0.0
  %581 = vmatpush1.msra.mxu0 %v525
  %582 = vmatprep.subr.mxu0 0.0
  %583 = vmatpush1.msra.mxu0 %v530
  %584 = vmatprep.subr.mxu0 0.0
  %585 = vmatpush1.msra.mxu0 %v535
  %586 = vmatprep.subr.mxu0 0.0
  %587 = vmatpush1.msra.mxu0 %v540
  %588 = vmatprep.subr.mxu0 0.0
  %589 = vmatpush1.msra.mxu0 %v545
  %590 = vmatprep.subr.mxu0 0.0
  %591 = vmatpush1.msra.mxu0 %v550
  %592 = vmatprep.subr.mxu0 0.0
  %593 = vmatpush1.msra.mxu0 0.0
  %594 = vmatprep.subr.mxu0 0.0
  %595 = vmatpush1.msra.mxu0 0.0
  %596 = vmatprep.subr.mxu0 0.0
  %597 = vmatpush1.msra.mxu0 0.0
  %598 = vmatprep.subr.mxu0 0.0
  %599 = vmatpush1.msra.mxu0 0.0
  %600 = vmatprep.subr.mxu0 0.0
  %601 = vmatpush1.msra.mxu0 0.0
  %602 = vmatprep.subr.mxu0 0.0
  %603 = vmatpush1.msra.mxu0 0.0
  %604 = vmatprep.subr.mxu0 0.0
  %605 = vmatpush1.msra.mxu0 0.0
  %606 = vmatprep.subr.mxu0 0.0
  %607 = vmatpush1.msra.mxu0 0.0
  %608 = vmatprep.subr.mxu0 0.0
  %609 = vmatpush1.msra.mxu0 0.0
  %610 = vmatprep.subr.mxu0 0.0
  %611 = vmatpush1.msra.mxu0 0.0
  %612 = vmatprep.subr.mxu0 0.0
  %613 = vmatpush1.msra.mxu0 0.0
  %614 = vmatprep.subr.mxu0 0.0
  %615 = vmatpush1.msra.mxu0 0.0
  %616 = vmatprep.subr.mxu0 0.0
  %617 = vmatpush1.msra.mxu0 0.0
  %618 = vmatprep.subr.mxu0 0.0
  %619 = vmatpush1.msra.mxu0 0.0
  %620 = vmatprep.subr.mxu0 0.0
  %621 = vmatpush1.msra.mxu0 0.0
  %622 = vmatprep.subr.mxu0 0.0
  %623 = vmatpush1.msra.mxu0 0.0
  %624 = vmatprep.mubr.f32.mxu0 0.0
  %625 = vmatmul.mubr.f32.gmra.mrb[0].mxu0 %v31
  %v626 = vpop.f32.mrb[0].mxu0
  %v627 = vadd.f32 %v558, %v626
  %v628 = vpop.f32.mrb[0].mxu0
  %629 = vmatprep.mubr.f32.mxu0 0.0
  %630 = vmatmul.mubr.f32.gmra.mrb[0].mxu0 %v32
  %v631 = vpop.f32.mrb[0].mxu0
  %v632 = vadd.f32 %v558, %v631
  %v633 = vpop.f32.mrb[0].mxu0
  %634 = vmatprep.mubr.f32.mxu0 0.0
  %635 = vmatmul.mubr.f32.gmra.mrb[0].mxu0 %v33
  %v636 = vpop.f32.mrb[0].mxu0
  %v637 = vadd.f32 %v558, %v636
  %v638 = vpop.f32.mrb[0].mxu0
  %639 = vmatprep.mubr.f32.mxu0 0.0
  %640 = vmatmul.mubr.f32.gmra.mrb[0].mxu0 %v34
  %v641 = vpop.f32.mrb[0].mxu0
  %v642 = vadd.f32 %v558, %v641
  %v643 = vpop.f32.mrb[0].mxu0
  %644 = vmatprep.mubr.f32.mxu0 0.0
  %645 = vmatmul.mubr.f32.gmra.mrb[0].mxu0 %v35
  %v646 = vpop.f32.mrb[0].mxu0
  %v647 = vadd.f32 %v558, %v646
  %v648 = vpop.f32.mrb[0].mxu0
  %649 = vmatprep.mubr.f32.mxu0 0.0
  %650 = vmatmul.mubr.f32.gmra.mrb[0].mxu0 %v36
  %v651 = vpop.f32.mrb[0].mxu0
  %v652 = vadd.f32 %v558, %v651
  %v653 = vpop.f32.mrb[0].mxu0
  %654 = vmatprep.mubr.f32.mxu0 0.0
  %655 = vmatmul.mubr.f32.gmra.mrb[0].mxu0 %v37
  %v656 = vpop.f32.mrb[0].mxu0
  %v657 = vadd.f32 %v558, %v656
  %v658 = vpop.f32.mrb[0].mxu0
  %659 = vmatprep.mubr.f32.mxu0 0.0
  %660 = vmatmul.mubr.f32.gmra.mrb[0].mxu0 %v38
  %v661 = vpop.f32.mrb[0].mxu0
  %v662 = vadd.f32 %v558, %v661
  %v663 = vpop.f32.mrb[0].mxu0
  %664 = vmatprep.mubr.f32.mxu0 0.0
  %665 = vmatmul.mubr.f32.gmra.mrb[0].mxu0 %v39
  %v666 = vpop.f32.mrb[0].mxu0
  %v667 = vadd.f32 %v558, %v666
  %v668 = vpop.f32.mrb[0].mxu0
  %669 = vmatprep.mubr.f32.mxu0 0.0
  %670 = vmatmul.mubr.f32.gmra.mrb[0].mxu0 %v40
  %v671 = vpop.f32.mrb[0].mxu0
  %v672 = vadd.f32 %v558, %v671
  %v673 = vpop.f32.mrb[0].mxu0
  %674 = vmatprep.mubr.f32.mxu0 0.0
  %675 = vmatmul.mubr.f32.gmra.mrb[0].mxu0 %v41
  %v676 = vpop.f32.mrb[0].mxu0
  %v677 = vadd.f32 %v558, %v676
  %v678 = vpop.f32.mrb[0].mxu0
  %679 = vmatprep.mubr.f32.mxu0 0.0
  %680 = vmatmul.mubr.f32.gmra.mrb[0].mxu0 %v42
  %v681 = vpop.f32.mrb[0].mxu0
  %v682 = vadd.f32 %v558, %v681
  %v683 = vpop.f32.mrb[0].mxu0
  %684 = vmatprep.mubr.f32.mxu0 0.0
  %685 = vmatmul.mubr.f32.gmra.mrb[0].mxu0 %v43
  %v686 = vpop.f32.mrb[0].mxu0
  %v687 = vadd.f32 %v558, %v686
  %v688 = vpop.f32.mrb[0].mxu0
  %689 = vmatprep.mubr.f32.mxu0 0.0
  %690 = vmatmul.mubr.f32.gmra.mrb[0].mxu0 %v44
  %v691 = vpop.f32.mrb[0].mxu0
  %v692 = vadd.f32 %v558, %v691
  %v693 = vpop.f32.mrb[0].mxu0
  %694 = vmatprep.mubr.f32.mxu0 0.0
  %695 = vmatmul.mubr.f32.gmra.mrb[0].mxu0 %v45
  %v696 = vpop.f32.mrb[0].mxu0
  %v697 = vadd.f32 %v558, %v696
  %v698 = vpop.f32.mrb[0].mxu0
  %699 = vmatprep.mubr.f32.mxu0 0.0
  %700 = vmatmul.mubr.f32.gmra.mrb[0].mxu0 %v46
  %v701 = vpop.f32.mrb[0].mxu0
  %v702 = vadd.f32 %v558, %v701
  %v703 = vpop.f32.mrb[0].mxu0
  %704 = vdwg.mxu0
  %v705 = vtanh.pop %v627
  %v706 = vtanh.pop %v632
  %v707 = vtanh.pop %v637
  %v708 = vtanh.pop %v642
  %v709 = vtanh.pop %v647
  %v710 = vtanh.pop %v652
  %v711 = vtanh.pop %v657
  %v712 = vtanh.pop %v662
  %v713 = vtanh.pop %v667
  %v714 = vtanh.pop %v672
  %v715 = vtanh.pop %v677
  %v716 = vtanh.pop %v682
  %v717 = vtanh.pop %v687
  %v718 = vtanh.pop %v692
  %v719 = vtanh.pop %v697
  %v720 = vtanh.pop %v702
  %v721 = vld [vmem:[%s6] sm:$0xff]
  %v722 = vld [vmem:[%s6 + $0x8] sm:$0xff]
  %v723 = vld [vmem:[%s6 + $0x10] sm:$0xff]
  %v724 = vld [vmem:[%s6 + $0x18] sm:$0xff]
  %v725 = vld [vmem:[%s6 + $0x20] sm:$0xff]
  %v726 = vld [vmem:[%s6 + $0x28] sm:$0xff]
  %v727 = vld [vmem:[%s6 + $0x30] sm:$0xff]
  %v728 = vld [vmem:[%s6 + $0x38] sm:$0xff]
  %v729 = vld [vmem:[%s6 + $0x40] sm:$0xff]
  %v730 = vld [vmem:[%s6 + $0x48] sm:$0xff]
  %v731 = vld [vmem:[%s6 + $0x50] sm:$0xff]
  %v732 = vld [vmem:[%s6 + $0x58] sm:$0xff]
  %v733 = vld [vmem:[%s6 + $0x60] sm:$0xff]
  %v734 = vld [vmem:[%s6 + $0x68] sm:$0xff]
  %v735 = vld [vmem:[%s6 + $0x70] sm:$0xff]
  %v736 = vld [vmem:[%s6 + $0x78] sm:$0xff]
  %v737 = vld [vmem:[%s7] sm:$0x1]
  %v739 = vlaneseq
  %v740 = vshrl.u32 %v739, 7
  %v741 = vsub.s32 0, %v740
  %v742 = vrot.slane %v737, %v741
  %744 = vmatprep.subr.mxu0 0.0
  %745 = vmatpush1.msra.mxu0 %v721
  %746 = vmatprep.subr.mxu0 0.0
  %747 = vmatpush1.msra.mxu0 %v722
  %748 = vmatprep.subr.mxu0 0.0
  %749 = vmatpush1.msra.mxu0 %v723
  %750 = vmatprep.subr.mxu0 0.0
  %751 = vmatpush1.msra.mxu0 %v724
  %752 = vmatprep.subr.mxu0 0.0
  %753 = vmatpush1.msra.mxu0 %v725
  %754 = vmatprep.subr.mxu0 0.0
  %755 = vmatpush1.msra.mxu0 %v726
  %756 = vmatprep.subr.mxu0 0.0
  %757 = vmatpush1.msra.mxu0 %v727
  %758 = vmatprep.subr.mxu0 0.0
  %759 = vmatpush1.msra.mxu0 %v728
  %760 = vmatprep.subr.mxu0 0.0
  %761 = vmatpush1.msra.mxu0 %v729
  %762 = vmatprep.subr.mxu0 0.0
  %763 = vmatpush1.msra.mxu0 %v730
  %764 = vmatprep.subr.mxu0 0.0
  %765 = vmatpush1.msra.mxu0 %v731
  %766 = vmatprep.subr.mxu0 0.0
  %767 = vmatpush1.msra.mxu0 %v732
  %768 = vmatprep.subr.mxu0 0.0
  %769 = vmatpush1.msra.mxu0 %v733
  %770 = vmatprep.subr.mxu0 0.0
  %771 = vmatpush1.msra.mxu0 %v734
  %772 = vmatprep.subr.mxu0 0.0
  %773 = vmatpush1.msra.mxu0 %v735
  %774 = vmatprep.subr.mxu0 0.0
  %775 = vmatpush1.msra.mxu0 %v736
  %776 = vmatprep.subr.mxu0 0.0
  %777 = vmatpush1.msra.mxu0 0.0
  %778 = vmatprep.subr.mxu0 0.0
  %779 = vmatpush1.msra.mxu0 0.0
  %780 = vmatprep.subr.mxu0 0.0
  %781 = vmatpush1.msra.mxu0 0.0
  %782 = vmatprep.subr.mxu0 0.0
  %783 = vmatpush1.msra.mxu0 0.0
  %784 = vmatprep.subr.mxu0 0.0
  %785 = vmatpush1.msra.mxu0 0.0
  %786 = vmatprep.subr.mxu0 0.0
  %787 = vmatpush1.msra.mxu0 0.0
  %788 = vmatprep.subr.mxu0 0.0
  %789 = vmatpush1.msra.mxu0 0.0
  %790 = vmatprep.subr.mxu0 0.0
  %791 = vmatpush1.msra.mxu0 0.0
  %792 = vmatprep.subr.mxu0 0.0
  %793 = vmatpush1.msra.mxu0 0.0
  %794 = vmatprep.subr.mxu0 0.0
  %795 = vmatpush1.msra.mxu0 0.0
  %796 = vmatprep.subr.mxu0 0.0
  %797 = vmatpush1.msra.mxu0 0.0
  %798 = vmatprep.subr.mxu0 0.0
  %799 = vmatpush1.msra.mxu0 0.0
  %800 = vmatprep.subr.mxu0 0.0
  %801 = vmatpush1.msra.mxu0 0.0
  %802 = vmatprep.subr.mxu0 0.0
  %803 = vmatpush1.msra.mxu0 0.0
  %804 = vmatprep.subr.mxu0 0.0
  %805 = vmatpush1.msra.mxu0 0.0
  %806 = vmatprep.subr.mxu0 0.0
  %807 = vmatpush1.msra.mxu0 0.0
  %808 = vmatprep.mubr.f32.mxu0 0.0
  %809 = vmatmul.mubr.f32.gmra.mrb[0].mxu0 %v705
  %v810 = vpop.f32.mrb[0].mxu0
  %v811 = vadd.f32 %v742, %v810
  %v812 = vpop.f32.mrb[0].mxu0
  %813 = vmatprep.mubr.f32.mxu0 0.0
  %814 = vmatmul.mubr.f32.gmra.mrb[0].mxu0 %v706
  %v815 = vpop.f32.mrb[0].mxu0
  %v816 = vadd.f32 %v742, %v815
  %v817 = vpop.f32.mrb[0].mxu0
  %818 = vmatprep.mubr.f32.mxu0 0.0
  %819 = vmatmul.mubr.f32.gmra.mrb[0].mxu0 %v707
  %v820 = vpop.f32.mrb[0].mxu0
  %v821 = vadd.f32 %v742, %v820
  %v822 = vpop.f32.mrb[0].mxu0
  %823 = vmatprep.mubr.f32.mxu0 0.0
  %824 = vmatmul.mubr.f32.gmra.mrb[0].mxu0 %v708
  %v825 = vpop.f32.mrb[0].mxu0
  %v826 = vadd.f32 %v742, %v825
  %v827 = vpop.f32.mrb[0].mxu0
  %828 = vmatprep.mubr.f32.mxu0 0.0
  %829 = vmatmul.mubr.f32.gmra.mrb[0].mxu0 %v709
  %v830 = vpop.f32.mrb[0].mxu0
  %v831 = vadd.f32 %v742, %v830
  %v832 = vpop.f32.mrb[0].mxu0
  %833 = vmatprep.mubr.f32.mxu0 0.0
  %834 = vmatmul.mubr.f32.gmra.mrb[0].mxu0 %v710
  %v835 = vpop.f32.mrb[0].mxu0
  %v836 = vadd.f32 %v742, %v835
  %v837 = vpop.f32.mrb[0].mxu0
  %838 = vmatprep.mubr.f32.mxu0 0.0
  %839 = vmatmul.mubr.f32.gmra.mrb[0].mxu0 %v711
  %v840 = vpop.f32.mrb[0].mxu0
  %v841 = vadd.f32 %v742, %v840
  %v842 = vpop.f32.mrb[0].mxu0
  %843 = vmatprep.mubr.f32.mxu0 0.0
  %844 = vmatmul.mubr.f32.gmra.mrb[0].mxu0 %v712
  %v845 = vpop.f32.mrb[0].mxu0
  %v846 = vadd.f32 %v742, %v845
  %v847 = vpop.f32.mrb[0].mxu0
  %848 = vmatprep.mubr.f32.mxu0 0.0
  %849 = vmatmul.mubr.f32.gmra.mrb[0].mxu0 %v713
  %v850 = vpop.f32.mrb[0].mxu0
  %v851 = vadd.f32 %v742, %v850
  %v852 = vpop.f32.mrb[0].mxu0
  %853 = vmatprep.mubr.f32.mxu0 0.0
  %854 = vmatmul.mubr.f32.gmra.mrb[0].mxu0 %v714
  %v855 = vpop.f32.mrb[0].mxu0
  %v856 = vadd.f32 %v742, %v855
  %v857 = vpop.f32.mrb[0].mxu0
  %858 = vmatprep.mubr.f32.mxu0 0.0
  %859 = vmatmul.mubr.f32.gmra.mrb[0].mxu0 %v715
  %v860 = vpop.f32.mrb[0].mxu0
  %v861 = vadd.f32 %v742, %v860
  %v862 = vpop.f32.mrb[0].mxu0
  %863 = vmatprep.mubr.f32.mxu0 0.0
  %864 = vmatmul.mubr.f32.gmra.mrb[0].mxu0 %v716
  %v865 = vpop.f32.mrb[0].mxu0
  %v866 = vadd.f32 %v742, %v865
  %v867 = vpop.f32.mrb[0].mxu0
  %868 = vmatprep.mubr.f32.mxu0 0.0
  %869 = vmatmul.mubr.f32.gmra.mrb[0].mxu0 %v717
  %v870 = vpop.f32.mrb[0].mxu0
  %v871 = vadd.f32 %v742, %v870
  %v872 = vpop.f32.mrb[0].mxu0
  %873 = vmatprep.mubr.f32.mxu0 0.0
  %874 = vmatmul.mubr.f32.gmra.mrb[0].mxu0 %v718
  %v875 = vpop.f32.mrb[0].mxu0
  %v876 = vadd.f32 %v742, %v875
  %v877 = vpop.f32.mrb[0].mxu0
  %878 = vmatprep.mubr.f32.mxu0 0.0
  %879 = vmatmul.mubr.f32.gmra.mrb[0].mxu0 %v719
  %v880 = vpop.f32.mrb[0].mxu0
  %v881 = vadd.f32 %v742, %v880
  %v882 = vpop.f32.mrb[0].mxu0
  %883 = vmatprep.mubr.f32.mxu0 0.0
  %884 = vmatmul.mubr.f32.gmra.mrb[0].mxu0 %v720
  %v885 = vpop.f32.mrb[0].mxu0
  %v886 = vadd.f32 %v742, %v885
  %v887 = vpop.f32.mrb[0].mxu0
  %888 = vdwg.mxu0
  %889 = vst [vmem:[%s8] sm:$0xff] %v811
  %890 = vst [vmem:[%s8 + $0x8] sm:$0xff] %v816
  %891 = vst [vmem:[%s8 + $0x10] sm:$0xff] %v821
  %892 = vst [vmem:[%s8 + $0x18] sm:$0xff] %v826
  %893 = vst [vmem:[%s8 + $0x20] sm:$0xff] %v831
  %894 = vst [vmem:[%s8 + $0x28] sm:$0xff] %v836
  %895 = vst [vmem:[%s8 + $0x30] sm:$0xff] %v841
  %896 = vst [vmem:[%s8 + $0x38] sm:$0xff] %v846
  %897 = vst [vmem:[%s8 + $0x40] sm:$0xff] %v851
  %898 = vst [vmem:[%s8 + $0x48] sm:$0xff] %v856
  %899 = vst [vmem:[%s8 + $0x50] sm:$0xff] %v861
  %900 = vst [vmem:[%s8 + $0x58] sm:$0xff] %v866
  %901 = vst [vmem:[%s8 + $0x60] sm:$0xff] %v871
  %902 = vst [vmem:[%s8 + $0x68] sm:$0xff] %v876
  %903 = vst [vmem:[%s8 + $0x70] sm:$0xff] %v881
  %904 = vst [vmem:[%s8 + $0x78] sm:$0xff] %v886
  %v905 = vlaneseq
  %v906 = vand.u32 %v905, 127
  %vm907 = vcmp.lt.s32.totalorder %v906, 4
  %v908 = vsel %vm907, %v811, -1e+30
  %v909 = vsel %vm907, %v816, -1e+30
  %v910 = vsel %vm907, %v821, -1e+30
  %v911 = vsel %vm907, %v826, -1e+30
  %v912 = vsel %vm907, %v831, -1e+30
  %v913 = vsel %vm907, %v836, -1e+30
  %v914 = vsel %vm907, %v841, -1e+30
  %v915 = vsel %vm907, %v846, -1e+30
  %v916 = vsel %vm907, %v851, -1e+30
  %v917 = vsel %vm907, %v856, -1e+30
  %v918 = vsel %vm907, %v861, -1e+30
  %v919 = vsel %vm907, %v866, -1e+30
  %v920 = vsel %vm907, %v871, -1e+30
  %v921 = vsel %vm907, %v876, -1e+30
  %v922 = vsel %vm907, %v881, -1e+30
  %v923 = vsel %vm907, %v886, -1e+30
  %924 = vmax.xlane.f32.xlu0 %v908
  %v925 = vpop.xlane.xlu0 %924
  %926 = vmax.xlane.f32.xlu0 %v909
  %v927 = vpop.xlane.xlu0 %926
  %928 = vmax.xlane.f32.xlu0 %v910
  %v929 = vpop.xlane.xlu0 %928
  %930 = vmax.xlane.f32.xlu0 %v911
  %v931 = vpop.xlane.xlu0 %930
  %932 = vmax.xlane.f32.xlu0 %v912
  %v933 = vpop.xlane.xlu0 %932
  %934 = vmax.xlane.f32.xlu0 %v913
  %v935 = vpop.xlane.xlu0 %934
  %936 = vmax.xlane.f32.xlu0 %v914
  %v937 = vpop.xlane.xlu0 %936
  %938 = vmax.xlane.f32.xlu0 %v915
  %v939 = vpop.xlane.xlu0 %938
  %940 = vmax.xlane.f32.xlu0 %v916
  %v941 = vpop.xlane.xlu0 %940
  %942 = vmax.xlane.f32.xlu0 %v917
  %v943 = vpop.xlane.xlu0 %942
  %944 = vmax.xlane.f32.xlu0 %v918
  %v945 = vpop.xlane.xlu0 %944
  %946 = vmax.xlane.f32.xlu0 %v919
  %v947 = vpop.xlane.xlu0 %946
  %948 = vmax.xlane.f32.xlu0 %v920
  %v949 = vpop.xlane.xlu0 %948
  %950 = vmax.xlane.f32.xlu0 %v921
  %v951 = vpop.xlane.xlu0 %950
  %952 = vmax.xlane.f32.xlu0 %v922
  %v953 = vpop.xlane.xlu0 %952
  %954 = vmax.xlane.f32.xlu0 %v923
  %v955 = vpop.xlane.xlu0 %954
  %v956 = vsub.f32 %v908, %v925
  %v957 = vsub.f32 %v909, %v927
  %v958 = vsub.f32 %v910, %v929
  %v959 = vsub.f32 %v911, %v931
  %v960 = vsub.f32 %v912, %v933
  %v961 = vsub.f32 %v913, %v935
  %v962 = vsub.f32 %v914, %v937
  %v963 = vsub.f32 %v915, %v939
  %v964 = vsub.f32 %v916, %v941
  %v965 = vsub.f32 %v917, %v943
  %v966 = vsub.f32 %v918, %v945
  %v967 = vsub.f32 %v919, %v947
  %v968 = vsub.f32 %v920, %v949
  %v969 = vsub.f32 %v921, %v951
  %v970 = vsub.f32 %v922, %v953
  %v971 = vsub.f32 %v923, %v955
  %v972 = vmul.f32 %v956, 1.442695
  %v973 = vpow.pop %v972
  %v974 = vmul.f32 %v957, 1.442695
  %v975 = vpow.pop %v974
  %v976 = vmul.f32 %v958, 1.442695
  %v977 = vpow.pop %v976
  %v978 = vmul.f32 %v959, 1.442695
  %v979 = vpow.pop %v978
  %v980 = vmul.f32 %v960, 1.442695
  %v981 = vpow.pop %v980
  %v982 = vmul.f32 %v961, 1.442695
  %v983 = vpow.pop %v982
  %v984 = vmul.f32 %v962, 1.442695
  %v985 = vpow.pop %v984
  %v986 = vmul.f32 %v963, 1.442695
  %v987 = vpow.pop %v986
  %v988 = vmul.f32 %v964, 1.442695
  %v989 = vpow.pop %v988
  %v990 = vmul.f32 %v965, 1.442695
  %v991 = vpow.pop %v990
  %v992 = vmul.f32 %v966, 1.442695
  %v993 = vpow.pop %v992
  %v994 = vmul.f32 %v967, 1.442695
  %v995 = vpow.pop %v994
  %v996 = vmul.f32 %v968, 1.442695
  %v997 = vpow.pop %v996
  %v998 = vmul.f32 %v969, 1.442695
  %v999 = vpow.pop %v998
  %v1000 = vmul.f32 %v970, 1.442695
  %v1001 = vpow.pop %v1000
  %v1002 = vmul.f32 %v971, 1.442695
  %v1003 = vpow.pop %v1002
  %1004 = vadd.xlane.f32.xlu0 %v973
  %v1005 = vpop.xlane.xlu0 %1004
  %1006 = vadd.xlane.f32.xlu0 %v975
  %v1007 = vpop.xlane.xlu0 %1006
  %1008 = vadd.xlane.f32.xlu0 %v977
  %v1009 = vpop.xlane.xlu0 %1008
  %1010 = vadd.xlane.f32.xlu0 %v979
  %v1011 = vpop.xlane.xlu0 %1010
  %1012 = vadd.xlane.f32.xlu0 %v981
  %v1013 = vpop.xlane.xlu0 %1012
  %1014 = vadd.xlane.f32.xlu0 %v983
  %v1015 = vpop.xlane.xlu0 %1014
  %1016 = vadd.xlane.f32.xlu0 %v985
  %v1017 = vpop.xlane.xlu0 %1016
  %1018 = vadd.xlane.f32.xlu0 %v987
  %v1019 = vpop.xlane.xlu0 %1018
  %1020 = vadd.xlane.f32.xlu0 %v989
  %v1021 = vpop.xlane.xlu0 %1020
  %1022 = vadd.xlane.f32.xlu0 %v991
  %v1023 = vpop.xlane.xlu0 %1022
  %1024 = vadd.xlane.f32.xlu0 %v993
  %v1025 = vpop.xlane.xlu0 %1024
  %1026 = vadd.xlane.f32.xlu0 %v995
  %v1027 = vpop.xlane.xlu0 %1026
  %1028 = vadd.xlane.f32.xlu0 %v997
  %v1029 = vpop.xlane.xlu0 %1028
  %1030 = vadd.xlane.f32.xlu0 %v999
  %v1031 = vpop.xlane.xlu0 %1030
  %1032 = vadd.xlane.f32.xlu0 %v1001
  %v1033 = vpop.xlane.xlu0 %1032
  %1034 = vadd.xlane.f32.xlu0 %v1003
  %v1035 = vpop.xlane.xlu0 %1034
  %v1036 = vlog2.pop %v1005
  %v1037 = vmul.f32 %v1036, 0.6931472
  %v1038 = vlog2.pop %v1007
  %v1039 = vmul.f32 %v1038, 0.6931472
  %v1040 = vlog2.pop %v1009
  %v1041 = vmul.f32 %v1040, 0.6931472
  %v1042 = vlog2.pop %v1011
  %v1043 = vmul.f32 %v1042, 0.6931472
  %v1044 = vlog2.pop %v1013
  %v1045 = vmul.f32 %v1044, 0.6931472
  %v1046 = vlog2.pop %v1015
  %v1047 = vmul.f32 %v1046, 0.6931472
  %v1048 = vlog2.pop %v1017
  %v1049 = vmul.f32 %v1048, 0.6931472
  %v1050 = vlog2.pop %v1019
  %v1051 = vmul.f32 %v1050, 0.6931472
  %v1052 = vlog2.pop %v1021
  %v1053 = vmul.f32 %v1052, 0.6931472
  %v1054 = vlog2.pop %v1023
  %v1055 = vmul.f32 %v1054, 0.6931472
  %v1056 = vlog2.pop %v1025
  %v1057 = vmul.f32 %v1056, 0.6931472
  %v1058 = vlog2.pop %v1027
  %v1059 = vmul.f32 %v1058, 0.6931472
  %v1060 = vlog2.pop %v1029
  %v1061 = vmul.f32 %v1060, 0.6931472
  %v1062 = vlog2.pop %v1031
  %v1063 = vmul.f32 %v1062, 0.6931472
  %v1064 = vlog2.pop %v1033
  %v1065 = vmul.f32 %v1064, 0.6931472
  %v1066 = vlog2.pop %v1035
  %v1067 = vmul.f32 %v1066, 0.6931472
  %v1068 = vsub.f32 %v956, %v1037
  %v1069 = vsub.f32 %v957, %v1039
  %v1070 = vsub.f32 %v958, %v1041
  %v1071 = vsub.f32 %v959, %v1043
  %v1072 = vsub.f32 %v960, %v1045
  %v1073 = vsub.f32 %v961, %v1047
  %v1074 = vsub.f32 %v962, %v1049
  %v1075 = vsub.f32 %v963, %v1051
  %v1076 = vsub.f32 %v964, %v1053
  %v1077 = vsub.f32 %v965, %v1055
  %v1078 = vsub.f32 %v966, %v1057
  %v1079 = vsub.f32 %v967, %v1059
  %v1080 = vsub.f32 %v968, %v1061
  %v1081 = vsub.f32 %v969, %v1063
  %v1082 = vsub.f32 %v970, %v1065
  %v1083 = vsub.f32 %v971, %v1067
  %1084 = vst [vmem:[%s9] sm:$0xff] %v1068
  %1085 = vst [vmem:[%s9 + $0x8] sm:$0xff] %v1069
  %1086 = vst [vmem:[%s9 + $0x10] sm:$0xff] %v1070
  %1087 = vst [vmem:[%s9 + $0x18] sm:$0xff] %v1071
  %1088 = vst [vmem:[%s9 + $0x20] sm:$0xff] %v1072
  %1089 = vst [vmem:[%s9 + $0x28] sm:$0xff] %v1073
  %1090 = vst [vmem:[%s9 + $0x30] sm:$0xff] %v1074
  %1091 = vst [vmem:[%s9 + $0x38] sm:$0xff] %v1075
  %1092 = vst [vmem:[%s9 + $0x40] sm:$0xff] %v1076
  %1093 = vst [vmem:[%s9 + $0x48] sm:$0xff] %v1077
  %1094 = vst [vmem:[%s9 + $0x50] sm:$0xff] %v1078
  %1095 = vst [vmem:[%s9 + $0x58] sm:$0xff] %v1079
  %1096 = vst [vmem:[%s9 + $0x60] sm:$0xff] %v1080
  %1097 = vst [vmem:[%s9 + $0x68] sm:$0xff] %v1081
  %1098 = vst [vmem:[%s9 + $0x70] sm:$0xff] %v1082
  %1099 = vst [vmem:[%s9 + $0x78] sm:$0xff] %v1083
  // Predicated region
  $region34: #{qgcn_forward.1} parent=0 // pred_check
    _
  $region35: #{qgcn_forward.1} parent=0 // pred_check_branch
    %1101 = sbr.rel (0) target = $region37
  $region36: #{qgcn_forward.1} parent=0 // pred_region
    _
  $region37: #{qgcn_forward.1} parent=0 // pred_fallthru
    _
  // Predicated region
  $region38: #{qgcn_forward.1} parent=0 // pred_check
    _
  $region39: #{qgcn_forward.1} parent=0 // pred_check_branch
    %1103 = sbr.rel (0) target = $region41
  $region40: #{qgcn_forward.1} parent=0 // pred_region
    _
  $region41: #{qgcn_forward.1} parent=0 // pred_fallthru
    _
  // Predicated region
  $region42: #{qgcn_forward.1} parent=0 // pred_check
    _
  $region43: #{qgcn_forward.1} parent=0 // pred_check_branch
    %1105 = sbr.rel (0) target = $region45
  $region44: #{qgcn_forward.1} parent=0 // pred_region
    _
  $region45: #{qgcn_forward.1} parent=0 // pred_fallthru
    _
  // Predicated region
  $region46: #{qgcn_forward.1} parent=0 // pred_check
    _
  $region47: #{qgcn_forward.1} parent=0 // pred_check_branch
    %1107 = sbr.rel (0) target = $region49
  $region48: #{qgcn_forward.1} parent=0 // pred_region
    _
  $region49: #{qgcn_forward.1} parent=0 // pred_fallthru
    _

</llo_original>
